<compile_context>
chip_gen: v7x
topology: tpu7x:2x2x1
jax: 0.10.0
libtpu: 0.0.40
codegen_flags: <defaults>
</compile_context>

<pallas_src>
import functools
import math

import jax
import jax.numpy as jnp
from jax.experimental import pallas as pl
from jax.experimental.pallas import tpu as pltpu


def _pos_enc_kernel(x_ref, w_ref, o_ref, *, batch):
    # x_ref: (ts, B*D) tile of the (lane-dense) input
    # w_ref: (ts, D)   matching rows of the positional-embedding table
    pe = jnp.tile(w_ref[...], (1, batch))          # (ts, B*D): broadcast over batch
    o_ref[...] = (x_ref[...] + pe).astype(o_ref.dtype)


def _pos_enc_dropout_kernel(x_ref, w_ref, bits_ref, o_ref, *, batch, threshold, inv_keep):
    pe = jnp.tile(w_ref[...], (1, batch))          # (ts, B*D)
    y = x_ref[...] + pe
    # inverted dropout: keep with prob (1 - p) via integer threshold compare
    keep = bits_ref[...] >= jnp.uint32(threshold)
    o_ref[...] = jnp.where(keep, y * jnp.asarray(inv_keep, y.dtype),
                           jnp.zeros_like(y)).astype(o_ref.dtype)


def _choose_seq_tile(S, row_bytes, budget_bytes):
    """Largest seq tile whose x-block fits the per-block VMEM budget."""
    max_rows = max(1, budget_bytes // max(row_bytes, 1))
    if S <= max_rows:
        return S  # single block covers the whole array (block dim == full dim)
    best = None
    for t in range(8, max_rows + 1, 8):            # multiple-of-8 sublane dim
        if S % t == 0:
            best = t
    if best is not None:
        return best
    # TODO(synk): pad S for awkward sequence lengths instead of falling back
    # to one full-extent block (may exceed the VMEM budget for huge S).
    return S


def positional_encoding(x, pos_embed_weight, *, dropout_p=0.1, train=False,
                        rng_key=None, block_bytes=2 << 20):
    """x: (S, B, D); pos_embed_weight: (max_len, D). Returns (S, B, D)."""
    S, B, D = x.shape
    max_len, d_model = pos_embed_weight.shape
    assert d_model == D and S <= max_len

    # Lane-dense 2-D views (contiguous reshape — free in XLA).
    x2 = x.reshape(S, B * D)
    w = pos_embed_weight[:S].astype(x.dtype)       # (S, D), only the rows we need

    itemsize = jnp.dtype(x.dtype).itemsize
    seq_tile = _choose_seq_tile(S, B * D * itemsize, block_bytes)
    grid = (S // seq_tile,)

    in_specs = [
        pl.BlockSpec((seq_tile, B * D), lambda i: (i, 0)),
        pl.BlockSpec((seq_tile, D), lambda i: (i, 0)),
    ]
    args = [x2, w]

    use_dropout = bool(train) and float(dropout_p) > 0.0
    if use_dropout:
        if rng_key is None:
            rng_key = jax.random.PRNGKey(0)
        # Random bits generated once outside the kernel: works on TPU and in
        # interpret mode, and the mask does not depend on the tiling choice.
        bits = jax.random.bits(rng_key, (S, B * D), dtype=jnp.uint32)
        threshold = min(int(round(float(dropout_p) * 2.0 ** 32)), (1 << 32) - 1)
        kernel = functools.partial(
            _pos_enc_dropout_kernel, batch=B, threshold=threshold,
            inv_keep=1.0 / (1.0 - float(dropout_p)))
        in_specs.append(pl.BlockSpec((seq_tile, B * D), lambda i: (i, 0)))
        args.append(bits)
        # TODO(synk): PyTorch's exact dropout RNG stream is not reproducible;
        # this uses a JAX PRNG stream (identical distribution/scaling).
    else:
        kernel = functools.partial(_pos_enc_kernel, batch=B)

    out2 = pl.pallas_call(
        kernel,
        out_shape=jax.ShapeDtypeStruct((S, B * D), x.dtype),
        grid_spec=pltpu.PrefetchScalarGridSpec(
            num_scalar_prefetch=0,
            grid=grid,
            in_specs=in_specs,
            out_specs=pl.BlockSpec((seq_tile, B * D), lambda i: (i, 0)),
        ),
        compiler_params=pltpu.CompilerParams(
            dimension_semantics=("parallel",)),   # shard seq axis across TCs (v7x)
    )(*args)
    return out2.reshape(S, B, D)


def init_pos_embed_weight(key, max_len, d_model):
    # nn.init.kaiming_normal_(W, mode='fan_in'):
    #   fan_in = W.size(1) = d_model, gain = sqrt(2)  =>  std = sqrt(2 / d_model)
    std = math.sqrt(2.0 / d_model)
    return jax.random.normal(key, (max_len, d_model), dtype=jnp.float32) * std


def positional_encoding_ref(x, w):
    # pure-JAX reference (eval mode: dropout = identity)
    S = x.shape[0]
    return x + w[:S][:, None, :]


if __name__ == "__main__":
    key = jax.random.PRNGKey(0)
    k_w, k_x, k_drop = jax.random.split(key, 3)

    d_model = 32
    max_len = 250
    S, B = 8, 2

    pos_embed_weight = init_pos_embed_weight(k_w, max_len, d_model)
    x = jax.random.normal(k_x, (S, B, d_model), dtype=jnp.float32)

    # eval-mode forward (dropout is identity) — deterministic check
    out = positional_encoding(x, pos_embed_weight, dropout_p=0.1, train=False)
    out = jax.block_until_ready(out)

    ref = positional_encoding_ref(x, pos_embed_weight)
    assert out.shape == (S, B, d_model)
    assert jnp.allclose(out, ref, atol=1e-5, rtol=1e-5)

    # training-mode path (inverted dropout inside the kernel)
    p = 0.1
    out_train = positional_encoding(x, pos_embed_weight, dropout_p=p,
                                    train=True, rng_key=k_drop)
    out_train = jax.block_until_ready(out_train)
    assert out_train.shape == (S, B, d_model)
    # every element is either dropped (0) or scaled by 1/(1-p)
    scaled = ref / (1.0 - p)
    ok = jnp.isclose(out_train, 0.0, atol=1e-6) | jnp.isclose(
        out_train, scaled, atol=1e-5, rtol=1e-5)
    assert bool(jnp.all(ok))

    print("KERNEL_OK")
</pallas_src>

<mosaic_0001>
module attributes {stable_mosaic.version = 11 : i64} {
  func.func @_pos_enc_kernel(%arg0: i32, %arg1: memref<8x64xf32, #tpu.memory_space<vmem>>, %arg2: memref<8x32xf32, #tpu.memory_space<vmem>>, %arg3: memref<8x64xf32, #tpu.memory_space<vmem>>) attributes {dimension_semantics = [#tpu.dimension_semantics<parallel>], iteration_bounds = array<i64: 1>, scalar_prefetch = 0 : i64, scratch_operands = 0 : i64, tpu.core_type = #tpu.core_type<tc>, window_params = [{transform_indices = @transform_0, window_bounds = array<i64: 8, 64>}, {transform_indices = @transform_1, window_bounds = array<i64: 8, 32>}, {transform_indices = @transform_2, window_bounds = array<i64: 8, 64>}]} {
    %c0 = arith.constant 0 : index
    %c0_0 = arith.constant 0 : index
    %0 = vector.load %arg2[%c0, %c0_0] : memref<8x32xf32, #tpu.memory_space<vmem>>, vector<8x32xf32>
    %1 = tpu.concatenate %0, %0 in 1 : vector<8x32xf32>, vector<8x32xf32> -> vector<8x64xf32>
    %c0_1 = arith.constant 0 : index
    %c0_2 = arith.constant 0 : index
    %2 = vector.load %arg1[%c0_1, %c0_2] : memref<8x64xf32, #tpu.memory_space<vmem>>, vector<8x64xf32>
    %3 = arith.addf %2, %1 : vector<8x64xf32>
    %c0_3 = arith.constant 0 : index
    %c0_4 = arith.constant 0 : index
    %4 = vector.load %arg3[%c0_3, %c0_4] : memref<8x64xf32, #tpu.memory_space<vmem>>, vector<8x64xf32>
    tpu.vector_store %arg3[%c0_3, %c0_4], %3 {strides = array<i32>} : memref<8x64xf32, #tpu.memory_space<vmem>>, vector<8x64xf32>,
    return
  }
  func.func @transform_0(%arg0: i32) -> (i32, i32) {
    %c0_i32 = arith.constant 0 : i32
    %c0_i32_0 = arith.constant 0 : i32
    return %arg0, %c0_i32 : i32, i32
  }
  func.func @transform_1(%arg0: i32) -> (i32, i32) {
    %c0_i32 = arith.constant 0 : i32
    %c0_i32_0 = arith.constant 0 : i32
    return %arg0, %c0_i32 : i32, i32
  }
  func.func @transform_2(%arg0: i32) -> (i32, i32) {
    %c0_i32 = arith.constant 0 : i32
    %c0_i32_0 = arith.constant 0 : i32
    return %arg0, %c0_i32 : i32, i32
  }
}

</mosaic_0001>

<llo_original>
// kernel: tpu_custom_call.1
$region0: #{tpu_custom_call.1}
  #allocation0 [shape = 'u32[]', space=smem, size = 0x4, offset = 0x4, fixed_abs, tag = 'smem constant byte address 0x4 - core index']
  #allocation1 [shape = 'u32[144,128]{1,0:T(1,128)}', space=vmem, size = 0x12000, scoped, tag = 'internal scratch']
  %s0 = inlined_call_operand.hbm [shape: f32[8,64], index: 0, kind: input, shape index: {}]
  %s1 = inlined_call_operand.hbm [shape: f32[8,32], index: 1, kind: input, shape index: {}]
  %s2 = inlined_call_operand.hbm [shape: f32[8,64], index: 2, kind: output, shape index: {}]
  %s3 = sld [smem:[#allocation0]]
  $region26: #{tpu_custom_call.1} parent=0
    _
  %s5 = ssub.s32 1, %s3
  %s6 = scalar_select 0, %s5, %s3
  $region1: #{tpu_custom_call.1} parent=0
    #allocation2 [shape = 'u8[4096]{0}', space=vmem, size = 0x1000, scoped, tag = 'input window, operand 0, single buffered']
    #allocation3 [shape = 's32[1]{0}', space=sflag, size = 0x4, scoped, tag = 'scoped memory for tpu_custom_call.1']
    #allocation4 [shape = 's32[1]{0}', space=sflag, size = 0x4, scoped, tag = 'scoped memory for tpu_custom_call.1']
    #allocation5 [shape = 'u8[4096]{0}', space=vmem, size = 0x1000, scoped, tag = 'input window, operand 1, single buffered']
    #allocation6 [shape = 's32[1]{0}', space=sflag, size = 0x4, scoped, tag = 'scoped memory for tpu_custom_call.1']
    #allocation7 [shape = 'u8[4096]{0}', space=vmem, size = 0x1000, scoped, tag = 'output window, operand 0, single buffered']
    %7 = vsyncpa [#allocation3], 0
    %8 = vsyncpa [#allocation6], 0
    %9 = vsyncpa [#allocation4], 0
    // Predicated region
    $region2: #{tpu_custom_call.1} parent=1 // pred_check
      _
    $region3: #{tpu_custom_call.1} parent=1 // pred_check_branch
      %11 = sbr.rel (0) target = $region5
    $region4: #{tpu_custom_call.1} parent=1 // pred_region
      %s13 = ssub.s32 128, 128
      %14 = vsyncadd [#allocation3], %s13
      %s16 = sshll.u32 [#allocation2], 4
      %s17 = int_to_ptr.vmem [resolvable:$true] %s16
      %19 = dma.hbm_to_vmem [thread:$0]  %s0, 128, %s17, [#allocation3]
    $region5: #{tpu_custom_call.1} parent=1 // pred_fallthru
      _
    // Predicated region
    $region6: #{tpu_custom_call.1} parent=1 // pred_check
      _
    $region7: #{tpu_custom_call.1} parent=1 // pred_check_branch
      %21 = sbr.rel (0) target = $region9
    $region8: #{tpu_custom_call.1} parent=1 // pred_region
      %s23 = ssub.s32 128, 128
      %24 = vsyncadd [#allocation6], %s23
      %s26 = sshll.u32 [#allocation5], 4
      %s27 = int_to_ptr.vmem [resolvable:$true] %s26
      %29 = dma.hbm_to_vmem [thread:$0]  %s1, 128, %s27, [#allocation6]
    $region9: #{tpu_custom_call.1} parent=1 // pred_fallthru
      _
    // Predicated region
    $region10: #{tpu_custom_call.1} parent=1 // pred_check
      _
    $region11: #{tpu_custom_call.1} parent=1 // pred_check_branch
      %31 = sbr.rel (0) target = $region13
    $region12: #{tpu_custom_call.1} parent=1 // pred_region
      %32 = dma.done [#allocation3], 128
    $region13: #{tpu_custom_call.1} parent=1 // pred_fallthru
      _
    // Predicated region
    $region14: #{tpu_custom_call.1} parent=1 // pred_check
      _
    $region15: #{tpu_custom_call.1} parent=1 // pred_check_branch
      %34 = sbr.rel (0) target = $region17
    $region16: #{tpu_custom_call.1} parent=1 // pred_region
      %35 = dma.done [#allocation6], 128
    $region17: #{tpu_custom_call.1} parent=1 // pred_fallthru
      _
    %v36 = vld [vmem:[#allocation5] sm:$0xff]
    %38 = vrot.lane.b32.xlu0 %v36, 32
    %v39 = vpop.permute.xlu0 %38
    %vm41 = vcmask 261120
    %v42 = vsel %vm41, %v36, %v39
    %v43 = vld [vmem:[#allocation2] sm:$0xff]
    %v44 = vadd.f32 %v43, %v42
    %vm45 = vcmask 523264
    %46 = vst.msk [vmem:[#allocation7] sm:$0xff] %vm45, %v44
    // Predicated region
    $region18: #{tpu_custom_call.1} parent=1 // pred_check
      _
    $region19: #{tpu_custom_call.1} parent=1 // pred_check_branch
      %48 = sbr.rel (0) target = $region21
    $region20: #{tpu_custom_call.1} parent=1 // pred_region
      %s50 = ssub.s32 128, 128
      %51 = vsyncadd [#allocation4], %s50
      %s53 = sshll.u32 [#allocation7], 4
      %s54 = int_to_ptr.vmem [resolvable:$true] %s53
      %56 = dma.vmem_to_hbm [thread:$0]  %s54, 128, %s2, [#allocation4]
    $region21: #{tpu_custom_call.1} parent=1 // pred_fallthru
      _
    // Predicated region
    $region22: #{tpu_custom_call.1} parent=1 // pred_check
      _
    $region23: #{tpu_custom_call.1} parent=1 // pred_check_branch
      %58 = sbr.rel (0) target = $region25
    $region24: #{tpu_custom_call.1} parent=1 // pred_region
      %59 = dma.done [#allocation4], 128
    $region25: #{tpu_custom_call.1} parent=1 // pred_fallthru
      _
    %60 = vsyncpa [#allocation3], 1
    %61 = vsyncpa [#allocation6], 1
    %62 = vsyncpa [#allocation4], 1

</llo_original>
